<compile_context>
chip_gen: v7x
topology: tpu7x:2x2x1
jax: 0.10.0
libtpu: 0.0.40
codegen_flags: <defaults>
</compile_context>

<pallas_src>
from functools import partial

import jax
import jax.numpy as jnp
from jax import lax
from jax.experimental import pallas as pl
from jax.experimental.pallas import tpu as pltpu


def _round_up(a: int, b: int) -> int:
    return -(-a // b) * b


def _cfg_dropout_kernel(seed_ref, x_ref, o_ref, *, thr32: int, tile_rows: int,
                        lanes: int, splits: int):
    pid = pl.program_id(0)
    rows_h = tile_rows // splits            # rows covered by one hash "word" row
    n_words = rows_h * lanes                # 32-bit hash words per tile

    # Hoisted scalar: per-tile word offset + seed mix (single SMEM scalar add).
    seed_u32 = seed_ref[0].astype(jnp.uint32)
    base = (pid * n_words).astype(jnp.uint32) + seed_u32 * jnp.uint32(0x9E3779B9)

    # Per-word unique index: (row << 7) + col  (lanes == 128), no vector muls.
    r = lax.broadcasted_iota(jnp.int32, (rows_h, lanes), 0).astype(jnp.uint32)
    c = lax.broadcasted_iota(jnp.int32, (rows_h, lanes), 1).astype(jnp.uint32)
    z = (r << 7) + c + base

    # lowbias32 / splitmix32-style finalizer: 2 xor-shift-multiply rounds
    # (plenty for dropout-quality bits), pure VPU integer ops.
    z = (z ^ (z >> 16)) * jnp.uint32(0x7FEB352D)
    z = (z ^ (z >> 15)) * jnp.uint32(0x846CA68B)
    z = z ^ (z >> 16)

    if splits == 1:
        # keep  <=>  uniform[0,1) > p  <=>  bits >= floor(p * 2^32)
        keep = z >= jnp.uint32(thr32)
        x = x_ref[...]
        o_ref[...] = jnp.where(keep, x, jnp.zeros_like(x))
    else:
        # One 32-bit hash -> two independent 16-bit keep decisions, applied to
        # the bottom / top halves of the block (no sublane interleave needed).
        thr16 = jnp.uint32(thr32 >> 16)
        keep_lo = (z & jnp.uint32(0xFFFF)) >= thr16
        keep_hi = (z >> 16) >= thr16
        x_lo = x_ref[:rows_h, :]
        x_hi = x_ref[rows_h:, :]
        o_ref[:rows_h, :] = jnp.where(keep_lo, x_lo, jnp.zeros_like(x_lo))
        o_ref[rows_h:, :] = jnp.where(keep_hi, x_hi, jnp.zeros_like(x_hi))


def _cfg_dropout_jnp(x: jax.Array, p: float, seed: int) -> jax.Array:
    """Fused plain-jnp fallback for tiny tensors (same hash, same semantics)."""
    thr32 = jnp.uint32(min(int(float(p) * 4294967296.0), 0xFFFFFFFF))
    seed_mix = ((int(seed) & 0xFFFFFFFF) * 0x9E3779B9) & 0xFFFFFFFF
    flat = x.reshape(-1)
    z = lax.iota(jnp.uint32, flat.shape[0]) + jnp.uint32(seed_mix)
    z = (z ^ (z >> 16)) * jnp.uint32(0x7FEB352D)
    z = (z ^ (z >> 15)) * jnp.uint32(0x846CA68B)
    z = z ^ (z >> 16)
    keep = z >= thr32
    return jnp.where(keep, flat, jnp.zeros_like(flat)).reshape(x.shape)


def classifier_free_guidance_dropout(
    x: jax.Array,
    p: float,
    seed: int = 1234,
    training: bool = True,
    *,
    min_kernel_bytes: int = 1 << 20,
) -> jax.Array:
    """Pallas implementation of ClassifierFreeGuidanceDropout.forward."""
    if (not training) or p <= 0.0:
        return x
    if p >= 1.0:
        return jnp.zeros_like(x)

    total = int(x.size)
    if total == 0:
        return x

    orig_shape = x.shape
    dtype = x.dtype
    itemsize = jnp.dtype(dtype).itemsize

    # Tiny tensors: pallas_call launch + per-step overhead dominates; use a
    # fused XLA elementwise path with identical semantics.
    if total * itemsize < min_kernel_bytes:
        return _cfg_dropout_jnp(x, float(p), int(seed))

    LANES = 128
    rem = total % LANES
    if rem == 0:
        m_rows = total // LANES
        x2 = x.reshape(m_rows, LANES)                       # free (contiguous)
    else:
        # Pad only the <128-element tail (never up to a full tile multiple).
        m_rows = total // LANES + 1
        x2 = jnp.pad(x.reshape(-1), (0, LANES - rem)).reshape(m_rows, LANES)

    # ~8 MiB of input per block: amortizes per-grid-step overhead on all chips,
    # but keep >= MIN_GRID blocks so both v7x TensorCores stay busy.
    ROWS_TARGET = max(32, (8 * 1024 * 1024) // (LANES * itemsize))
    MIN_GRID = 4
    if m_rows < 32:
        tile_m = m_rows                    # full-extent block, no (8,128) issue
    else:
        tile_m = max(32, min(ROWS_TARGET, _round_up(-(-m_rows // MIN_GRID), 32)))
    grid = (pl.cdiv(m_rows, tile_m),)

    # 16-bit dtypes: amortize one 32-bit hash over 2 elements.
    splits = 2 if (itemsize == 2 and tile_m % 32 == 0) else 1

    # Double-buffered in + out = 4x tile; raise the scoped VMEM limit so the
    # big tiles compile on v5e (16 MiB default) and v7x (32 MiB default).
    tile_bytes = tile_m * LANES * itemsize
    vmem_limit = int(min(56 << 20, max(32 << 20, 4 * tile_bytes + (4 << 20))))

    thr32 = min(int(float(p) * 4294967296.0), 0xFFFFFFFF)
    seed_u = int(seed) & 0xFFFFFFFF
    seed_i32 = seed_u - (1 << 32) if seed_u >= (1 << 31) else seed_u
    seed_arr = jnp.asarray([seed_i32], dtype=jnp.int32)

    # NOTE: if xprof on v7x still shows exposed input DMA (2 TCs contending for
    # HBM), add pipeline_mode=pl.Buffered(3) to the input BlockSpec.
    out = pl.pallas_call(
        partial(_cfg_dropout_kernel, thr32=thr32, tile_rows=tile_m,
                lanes=LANES, splits=splits),
        out_shape=jax.ShapeDtypeStruct((m_rows, LANES), dtype),
        grid_spec=pltpu.PrefetchScalarGridSpec(
            num_scalar_prefetch=1,
            grid=grid,
            in_specs=[pl.BlockSpec((tile_m, LANES), lambda i, seed: (i, 0))],
            out_specs=pl.BlockSpec((tile_m, LANES), lambda i, seed: (i, 0)),
        ),
        compiler_params=pltpu.CompilerParams(
            dimension_semantics=("parallel",),
            vmem_limit_bytes=vmem_limit,
        ),
        cost_estimate=pl.CostEstimate(
            flops=8 * total,
            transcendentals=0,
            bytes_accessed=2 * m_rows * LANES * itemsize,
        ),
    )(seed_arr, x2)

    if rem == 0:
        return out.reshape(orig_shape)
    return out.reshape(-1)[:total].reshape(orig_shape)


if __name__ == "__main__":
    key = jax.random.PRNGKey(0)
    p = 0.3

    # Small NCHW-like input consistent with the module's "tensor inputs".
    x = jax.random.normal(key, (2, 4, 16, 16), dtype=jnp.float32)

    # Force the Pallas kernel path even for this small demo tensor.
    y = classifier_free_guidance_dropout(x, p=p, seed=1234, training=True,
                                         min_kernel_bytes=0)
    y = jax.block_until_ready(y)
    assert y.shape == x.shape and y.dtype == x.dtype
    # Every element is either kept exactly or exactly zero (no 1/(1-p) rescale).
    assert bool(jnp.all((y == x) | (y == 0)))
    drop_frac = float(jnp.mean((y == 0).astype(jnp.float32)))
    assert 0.15 < drop_frac < 0.45, drop_frac

    # bf16 path (one 32-bit hash drives two 16-bit keep decisions).
    xb = jax.random.normal(jax.random.PRNGKey(1), (2, 8, 16, 16), dtype=jnp.bfloat16)
    yb = jax.block_until_ready(
        classifier_free_guidance_dropout(xb, p=p, seed=7, training=True,
                                         min_kernel_bytes=0))
    assert yb.shape == xb.shape and yb.dtype == xb.dtype
    assert bool(jnp.all((yb == xb) | (yb == 0)))
    dfb = float(jnp.mean((yb == 0).astype(jnp.float32)))
    assert 0.15 < dfb < 0.45, dfb

    # Size not a multiple of 128: only the tail gets padded, still kernel path.
    xr = jax.random.normal(jax.random.PRNGKey(2), (3, 5, 7), dtype=jnp.float32)
    yr = jax.block_until_ready(
        classifier_free_guidance_dropout(xr, p=p, seed=3, training=True,
                                         min_kernel_bytes=0))
    assert yr.shape == xr.shape
    assert bool(jnp.all((yr == xr) | (yr == 0)))

    # Default path: tiny tensors take the fused-jnp fallback (same semantics).
    yj = jax.block_until_ready(
        classifier_free_guidance_dropout(x, p=p, seed=1234, training=True))
    assert bool(jnp.all((yj == x) | (yj == 0)))

    # Eval mode / p<=0 / p>=1 edge cases.
    assert bool(jnp.all(classifier_free_guidance_dropout(x, p=p, training=False) == x))
    assert bool(jnp.all(classifier_free_guidance_dropout(x, p=0.0, training=True) == x))
    assert bool(jnp.all(classifier_free_guidance_dropout(x, p=1.0, training=True) == 0))

    print("KERNEL_OK")
</pallas_src>

<mosaic_0001>
module attributes {stable_mosaic.version = 11 : i64} {
  func.func @_cfg_dropout_kernel(%arg0: i32, %arg1: memref<1xi32, #tpu.memory_space<smem>>, %arg2: memref<16x128xf32, #tpu.memory_space<vmem>>, %arg3: memref<16x128xf32, #tpu.memory_space<vmem>>) attributes {dimension_semantics = [#tpu.dimension_semantics<parallel>], iteration_bounds = array<i64: 1>, scalar_prefetch = 1 : i64, scratch_operands = 0 : i64, tpu.core_type = #tpu.core_type<tc>, window_params = [{transform_indices = @transform_0, window_bounds = array<i64: 16, 128>}, {transform_indices = @transform_1, window_bounds = array<i64: 16, 128>}]} {
    %c0 = arith.constant 0 : index
    %0 = memref.load %arg1[%c0] : memref<1xi32, #tpu.memory_space<smem>>
    %c2048_i32 = arith.constant 2048 : i32
    %1 = arith.muli %arg0, %c2048_i32 : i32
    %c-1640531527_i32 = arith.constant -1640531527 : i32
    %2 = arith.muli %0, %c-1640531527_i32 : i32
    %3 = arith.addi %1, %2 : i32
    %4 = tpu.iota {dimensions = array<i32: 0>} : vector<16x128xi32>
    %5 = tpu.iota {dimensions = array<i32: 1>} : vector<16x128xi32>
    %c7_i32 = arith.constant 7 : i32
    %6 = vector.broadcast %c7_i32 : i32 to vector<16x128xi32>
    %7 = arith.shli %4, %6 : vector<16x128xi32>
    %8 = arith.addi %7, %5 : vector<16x128xi32>
    %9 = vector.broadcast %3 : i32 to vector<16x128xi32>
    %10 = arith.addi %8, %9 : vector<16x128xi32>
    %c16_i32 = arith.constant 16 : i32
    %11 = vector.broadcast %c16_i32 : i32 to vector<16x128xi32>
    %12 = arith.shrui %10, %11 : vector<16x128xi32>
    %13 = arith.xori %10, %12 : vector<16x128xi32>
    %c2146121005_i32 = arith.constant 2146121005 : i32
    %14 = vector.broadcast %c2146121005_i32 : i32 to vector<16x128xi32>
    %15 = arith.muli %13, %14 : vector<16x128xi32>
    %c15_i32 = arith.constant 15 : i32
    %16 = vector.broadcast %c15_i32 : i32 to vector<16x128xi32>
    %17 = arith.shrui %15, %16 : vector<16x128xi32>
    %18 = arith.xori %15, %17 : vector<16x128xi32>
    %c-2073254261_i32 = arith.constant -2073254261 : i32
    %19 = vector.broadcast %c-2073254261_i32 : i32 to vector<16x128xi32>
    %20 = arith.muli %18, %19 : vector<16x128xi32>
    %c16_i32_0 = arith.constant 16 : i32
    %21 = vector.broadcast %c16_i32_0 : i32 to vector<16x128xi32>
    %22 = arith.shrui %20, %21 : vector<16x128xi32>
    %23 = arith.xori %20, %22 : vector<16x128xi32>
    %c1288490188_i32 = arith.constant 1288490188 : i32
    %24 = vector.broadcast %c1288490188_i32 : i32 to vector<16x128xi32>
    %25 = arith.cmpi uge, %23, %24 : vector<16x128xi32>
    %c0_1 = arith.constant 0 : index
    %c0_2 = arith.constant 0 : index
    %26 = vector.load %arg2[%c0_1, %c0_2] : memref<16x128xf32, #tpu.memory_space<vmem>>, vector<16x128xf32>
    %cst = arith.constant 0.000000e+00 : f32
    %27 = vector.broadcast %cst : f32 to vector<16x128xf32>
    %28 = arith.select %25, %26, %27 : vector<16x128xi1>, vector<16x128xf32>
    %c0_3 = arith.constant 0 : index
    %c0_4 = arith.constant 0 : index
    %29 = vector.load %arg3[%c0_3, %c0_4] : memref<16x128xf32, #tpu.memory_space<vmem>>, vector<16x128xf32>
    tpu.vector_store %arg3[%c0_3, %c0_4], %28 {strides = array<i32>} : memref<16x128xf32, #tpu.memory_space<vmem>>, vector<16x128xf32>,
    return
  }
  func.func @transform_0(%arg0: i32, %arg1: memref<1xi32, #tpu.memory_space<smem>>) -> (i32, i32) {
    %c0_i32 = arith.constant 0 : i32
    %c0_i32_0 = arith.constant 0 : i32
    return %arg0, %c0_i32 : i32, i32
  }
  func.func @transform_1(%arg0: i32, %arg1: memref<1xi32, #tpu.memory_space<smem>>) -> (i32, i32) {
    %c0_i32 = arith.constant 0 : i32
    %c0_i32_0 = arith.constant 0 : i32
    return %arg0, %c0_i32 : i32, i32
  }
}

</mosaic_0001>

<llo_original>
// kernel: tpu_custom_call.1
$region0: #{tpu_custom_call.1}
  #allocation0 [shape = 'u32[]', space=smem, size = 0x4, offset = 0x4, fixed_abs, tag = 'smem constant byte address 0x4 - core index']
  #allocation1 [shape = 'u32[144,128]{1,0:T(1,128)}', space=vmem, size = 0x12000, scoped, tag = 'internal scratch']
  #allocation2 [shape = 's32[1]{0}', space=sflag, size = 0x4, scoped, tag = 'scoped memory for tpu_custom_call.1']
  #allocation3 [shape = 's32[1]{0:T(128)S(6)}', space=smem, size = 0x200, scoped, tag = 'prefetched SMEM operand 0']
  %s0 = inlined_call_operand.<no memory space> [shape: s32[1], index: 0, kind: input, shape index: {}]
  %s1 = inlined_call_operand.hbm [shape: f32[16,128], index: 1, kind: input, shape index: {}]
  %s2 = inlined_call_operand.hbm [shape: f32[16,128], index: 2, kind: output, shape index: {}]
  %s3 = sld [smem:[#allocation0]]
  $region18: #{tpu_custom_call.1} parent=0
    _
  %s5 = ssub.s32 1, %s3
  %s6 = scalar_select 0, %s5, %s3
  %7 = sst [smem:[#allocation3]] %s0
  $region1: #{tpu_custom_call.1} parent=0
    #allocation4 [shape = 'u8[8192]{0}', space=vmem, size = 0x2000, scoped, tag = 'input window, operand 1, single buffered']
    #allocation5 [shape = 's32[1]{0}', space=sflag, size = 0x4, scoped, tag = 'scoped memory for tpu_custom_call.1']
    #allocation6 [shape = 's32[1]{0}', space=sflag, size = 0x4, scoped, tag = 'scoped memory for tpu_custom_call.1']
    #allocation7 [shape = 'u8[8192]{0}', space=vmem, size = 0x2000, scoped, tag = 'output window, operand 0, single buffered']
    %8 = vsyncpa [#allocation5], 0
    %9 = vsyncpa [#allocation6], 0
    // Predicated region
    $region2: #{tpu_custom_call.1} parent=1 // pred_check
      _
    $region3: #{tpu_custom_call.1} parent=1 // pred_check_branch
      %11 = sbr.rel (0) target = $region5
    $region4: #{tpu_custom_call.1} parent=1 // pred_region
      %s13 = ssub.s32 256, 256
      %14 = vsyncadd [#allocation5], %s13
      %s15 = sshll.u32 [#allocation4], 4
      %s16 = int_to_ptr.vmem [resolvable:$true] %s15
      %21 = dma.hbm_to_vmem [thread:$0]  %s1, 256, %s16, [#allocation5], 128, 128, 8
    $region5: #{tpu_custom_call.1} parent=1 // pred_fallthru
      _
    // Predicated region
    $region6: #{tpu_custom_call.1} parent=1 // pred_check
      _
    $region7: #{tpu_custom_call.1} parent=1 // pred_check_branch
      %23 = sbr.rel (0) target = $region9
    $region8: #{tpu_custom_call.1} parent=1 // pred_region
      %24 = dma.done [#allocation5], 256
    $region9: #{tpu_custom_call.1} parent=1 // pred_fallthru
      _
    %s25 = sld [smem:[#allocation3]]
    %s26 = smul.u32 0, 2048
    %s27 = smul.u32 %s25, 2654435769
    %s28 = sadd.s32 %s26, %s27
    %v29 = vlaneseq
    %v30 = vshrl.u32 %v29, 7
    %v31 = vadd.s32 %v30, 8
    %v32 = vlaneseq
    %v33 = vand.u32 %v32, 127
    %v34 = vshll.u32 %v30, 7
    %v35 = vshll.u32 %v31, 7
    %v36 = vadd.s32 %v34, %v33
    %v37 = vadd.s32 %v35, %v33
    %v38 = vstv %s28
    %v39 = vadd.s32 %v36, %v38
    %v40 = vadd.s32 %v37, %v38
    %v41 = vshrl.u32 %v39, 16
    %v42 = vshrl.u32 %v40, 16
    %v43 = vxor.u32 %v39, %v41
    %v44 = vxor.u32 %v40, %v42
    %v45 = vmul.u32 %v43, 2146121005
    %v46 = vmul.u32 %v44, 2146121005
    %v47 = vshrl.u32 %v45, 15
    %v48 = vshrl.u32 %v46, 15
    %v49 = vxor.u32 %v45, %v47
    %v50 = vxor.u32 %v46, %v48
    %v51 = vmul.u32 %v49, 2221713035
    %v52 = vmul.u32 %v50, 2221713035
    %v53 = vshrl.u32 %v51, 16
    %v54 = vshrl.u32 %v52, 16
    %v55 = vxor.u32 %v51, %v53
    %v56 = vxor.u32 %v52, %v54
    %vm57 = vcmp.ge.u32.totalorder %v55, 1288490188
    %vm58 = vcmp.ge.u32.totalorder %v56, 1288490188
    %v59 = vld [vmem:[#allocation4] sm:$0xff]
    %v60 = vld [vmem:[#allocation4 + $0x8] sm:$0xff]
    %v61 = vsel %vm57, %v59, 0.0
    %v62 = vsel %vm58, %v60, 0.0
    %63 = vst [vmem:[#allocation7] sm:$0xff] %v61
    %64 = vst [vmem:[#allocation7 + $0x8] sm:$0xff] %v62
    // Predicated region
    $region10: #{tpu_custom_call.1} parent=1 // pred_check
      _
    $region11: #{tpu_custom_call.1} parent=1 // pred_check_branch
      %66 = sbr.rel (0) target = $region13
    $region12: #{tpu_custom_call.1} parent=1 // pred_region
      %s68 = ssub.s32 256, 256
      %69 = vsyncadd [#allocation6], %s68
      %s70 = sshll.u32 [#allocation7], 4
      %s71 = int_to_ptr.vmem [resolvable:$true] %s70
      %76 = dma.vmem_to_hbm [thread:$0]  %s71, 256, %s2, [#allocation6], 128, 128, 8
    $region13: #{tpu_custom_call.1} parent=1 // pred_fallthru
      _
    // Predicated region
    $region14: #{tpu_custom_call.1} parent=1 // pred_check
      _
    $region15: #{tpu_custom_call.1} parent=1 // pred_check_branch
      %78 = sbr.rel (0) target = $region17
    $region16: #{tpu_custom_call.1} parent=1 // pred_region
      %79 = dma.done [#allocation6], 256
    $region17: #{tpu_custom_call.1} parent=1 // pred_fallthru
      _
    %80 = vsyncpa [#allocation5], 1
    %81 = vsyncpa [#allocation6], 1

</llo_original>
